<compile_context>
chip_gen: v7x
topology: tpu7x:2x2x1
jax: 0.10.0
libtpu: 0.0.40
codegen_flags: <defaults>
</compile_context>

<pallas_src>
import functools

import jax
import jax.numpy as jnp
from jax import lax
from jax.experimental import pallas as pl
from jax.experimental.pallas import tpu as pltpu

_LANE = 128


def _bn1d_train_kernel(x_ref, p_ref, y_ref, stats_ref, *,
                       eps: float, momentum: float, n: int):
    # p_ref rows:     0=weight, 1=bias, 2=running_mean, 3=running_var   (f32)
    # stats_ref rows: 0=new_running_mean, 1=new_running_var             (f32)

    # ---- Phase 1: shifted single-pass reduction over the batch axis -------
    # Subtracting a per-column pivot (row 0) before accumulating sum / sumsq
    # keeps the reduction single-pass while avoiding the catastrophic
    # cancellation of the plain E[x^2]-E[x]^2 form.
    pivot = x_ref[0:1, :].astype(jnp.float32)                 # (1, TF)
    x = x_ref[...].astype(jnp.float32)                        # (N, TF)
    d = x - pivot
    s = jnp.sum(d, axis=0, keepdims=True)                     # (1, TF)
    ss = jnp.sum(d * d, axis=0, keepdims=True)                # (1, TF)

    nf = jnp.float32(n)
    mean_d = s / nf
    mean = pivot + mean_d
    # Unbiased variance (torch.var default) — used for normalization AND the
    # running_var update, exactly like the module's training branch.
    var = jnp.maximum(ss - nf * mean_d * mean_d, 0.0) / jnp.float32(n - 1)

    inv_std = lax.rsqrt(var + jnp.float32(eps))               # EUP slot

    scale = p_ref[0:1, :] * inv_std                           # weight / std
    shift = p_ref[1:2, :] - mean * scale                      # bias - mean*scale

    # ---- Phase 2: normalization. Re-read x so the f32 reduction copy's live
    # range ends before this phase (frees ~N*TF*4 B of VMEM/vregs per step).
    xn = x_ref[...].astype(jnp.float32)
    y_ref[...] = (xn * scale + shift).astype(y_ref.dtype)

    # ---- Running-statistics update -----------------------------------------
    m = jnp.float32(momentum)
    stats_ref[0:1, :] = m * p_ref[2:3, :] + (1.0 - m) * mean
    stats_ref[1:2, :] = m * p_ref[3:4, :] + (1.0 - m) * var


def _vmem_capacity_bytes():
    try:
        cap = getattr(pltpu.get_tpu_info(), "vmem_capacity_bytes", None)
        if cap:
            return int(cap)
    except Exception:
        pass
    return 64 * 1024 * 1024  # conservative: v7x per-TensorCore VMEM


def _choose_tile_and_limit(n, f, in_bytes, out_bytes):
    """Pick (feature tile width, scoped VMEM limit) for the current chip."""
    # Generation-aware scoped VMEM limit:
    #   128 MiB physical (v5e/v6e) -> 96 MiB; 64 MiB physical (v7x) -> 48 MiB.
    vmem_cap = _vmem_capacity_bytes()
    vmem_limit = min(100 * 1024 * 1024, vmem_cap * 3 // 4)
    budget = vmem_limit * 3 // 4  # keep ~25% headroom for compiler scratch

    # Per-feature-column VMEM footprint per grid step:
    #   2x double-buffered x input + 2x double-buffered y output
    #   + ~8 B of in-kernel f32 working set (f32 copy + diff), all x N,
    #   + double-buffered (4 + 2) f32 param/stat rows.
    per_col = n * (2 * in_bytes + 2 * out_bytes + 8) + 2 * 6 * 4

    n_lane_blocks = pl.cdiv(f, _LANE)
    if n_lane_blocks <= 1:
        return f, vmem_limit  # single full-width tile (F <= 128)

    cols_vmem = max(_LANE, (budget // per_col) // _LANE * _LANE)
    # ~8 MiB of f32 x per tile is near the measured HBM-roofline sweet spot.
    cols_target = max(_LANE, ((8 * 1024 * 1024) // (n * 4)) // _LANE * _LANE)
    tf = int(min(cols_vmem, cols_target, 8192))

    # Keep >= 2 grid steps (megacore sharding on v7x), >= 4 for wide F
    # (DMA/compute overlap), as long as tiles stay lane-dense (>= 128).
    desired_steps = 2 if n_lane_blocks < 8 else 4
    while tf > _LANE and pl.cdiv(f, tf) < min(desired_steps, n_lane_blocks):
        tf = max(_LANE, (tf // 2) // _LANE * _LANE)
    return tf, vmem_limit


def batchnorm1d_train(x, weight, bias, running_mean, running_var,
                      momentum=0.9, eps=1e-8):
    """x: (N, F); weight/bias/running_*: (F,). Returns (y, new_rm, new_rv).

    Training-mode forward of the custom BatchNorm1d module (unbiased variance
    used for normalization; running' = momentum*running + (1-momentum)*batch).
    """
    n, f = x.shape
    if n < 2:
        raise ValueError("BatchNorm1d training forward needs batch size >= 2")

    itemsize = jnp.dtype(x.dtype).itemsize
    tf, vmem_limit = _choose_tile_and_limit(n, f, itemsize, itemsize)
    grid = (pl.cdiv(f, tf),)

    # All four (F,) params packed into one (4, F) array -> a single small DMA
    # per grid step instead of four; the two running-stat outputs likewise
    # share one (2, F) array. No padding / slicing of the big (N, F) arrays:
    # the ragged last feature tile is a Pallas partial edge block (masked
    # writes; garbage lanes stay harmless because all math is per-column).
    params = jnp.stack([
        weight.astype(jnp.float32),
        bias.astype(jnp.float32),
        running_mean.astype(jnp.float32),
        running_var.astype(jnp.float32),
    ], axis=0)

    kernel = functools.partial(_bn1d_train_kernel,
                               eps=float(eps), momentum=float(momentum), n=n)

    # TODO(synk): if the full batch no longer fits VMEM even at tf=128 (very
    # large N), add a trailing 'arbitrary' batch grid axis with scratch s/ss
    # accumulators and a second normalization pass; full-N-per-tile is
    # preferred whenever it fits.
    y, stats = pl.pallas_call(
        kernel,
        grid=grid,
        out_shape=(
            jax.ShapeDtypeStruct((n, f), x.dtype),
            jax.ShapeDtypeStruct((2, f), jnp.float32),
        ),
        in_specs=[
            pl.BlockSpec((n, tf), lambda j: (0, j)),   # x
            pl.BlockSpec((4, tf), lambda j: (0, j)),   # packed params
        ],
        out_specs=(
            pl.BlockSpec((n, tf), lambda j: (0, j)),   # y
            pl.BlockSpec((2, tf), lambda j: (0, j)),   # packed running stats
        ),
        compiler_params=pltpu.CompilerParams(
            dimension_semantics=("parallel",),
            vmem_limit_bytes=int(vmem_limit),
        ),
    )(x, params)

    return y, stats[0], stats[1]


if __name__ == "__main__":
    key = jax.random.PRNGKey(0)
    k_x, k_w = jax.random.split(key)

    N, F = 8, 32  # batch=8, num_features=32 (small demo shapes)

    x = jax.random.normal(k_x, (N, F), dtype=jnp.float32)

    # Parameter init matching the module's __init__:
    weight = jax.random.normal(k_w, (F,), dtype=jnp.float32)   # torch.randn
    bias = jnp.zeros((F,), dtype=jnp.float32)                  # torch.zeros
    running_mean = jnp.zeros((F,), dtype=jnp.float32)
    running_var = jnp.ones((F,), dtype=jnp.float32)

    y, new_rm, new_rv = batchnorm1d_train(
        x, weight, bias, running_mean, running_var, momentum=0.9, eps=1e-8)
    jax.block_until_ready((y, new_rm, new_rv))

    # Pure-JAX reference (same semantics as the module: unbiased var).
    mean_ref = jnp.mean(x, axis=0)
    var_ref = jnp.sum((x - mean_ref) ** 2, axis=0) / (N - 1)
    y_ref = weight * (x - mean_ref) / jnp.sqrt(var_ref + 1e-8) + bias
    rm_ref = 0.9 * running_mean + 0.1 * mean_ref
    rv_ref = 0.9 * running_var + 0.1 * var_ref

    assert y.shape == (N, F) and new_rm.shape == (F,) and new_rv.shape == (F,)
    assert jnp.allclose(y, y_ref, atol=1e-4, rtol=1e-4), "y mismatch"
    assert jnp.allclose(new_rm, rm_ref, atol=1e-5, rtol=1e-5), "running_mean mismatch"
    assert jnp.allclose(new_rv, rv_ref, atol=1e-5, rtol=1e-5), "running_var mismatch"

    print("KERNEL_OK")
</pallas_src>

<mosaic_0001>
module attributes {stable_mosaic.version = 11 : i64} {
  func.func @_bn1d_train_kernel(%arg0: i32, %arg1: memref<8x32xf32, #tpu.memory_space<vmem>>, %arg2: memref<4x32xf32, #tpu.memory_space<vmem>>, %arg3: memref<8x32xf32, #tpu.memory_space<vmem>>, %arg4: memref<2x32xf32, #tpu.memory_space<vmem>>) attributes {dimension_semantics = [#tpu.dimension_semantics<parallel>], iteration_bounds = array<i64: 1>, scalar_prefetch = 0 : i64, scratch_operands = 0 : i64, tpu.core_type = #tpu.core_type<tc>, window_params = [{transform_indices = @transform_0, window_bounds = array<i64: 8, 32>}, {transform_indices = @transform_1, window_bounds = array<i64: 4, 32>}, {transform_indices = @transform_2, window_bounds = array<i64: 8, 32>}, {transform_indices = @transform_3, window_bounds = array<i64: 2, 32>}]} {
    %c0 = arith.constant 0 : index
    %c0_0 = arith.constant 0 : index
    %0 = vector.load %arg1[%c0, %c0_0] : memref<8x32xf32, #tpu.memory_space<vmem>>, vector<1x32xf32>
    %c0_1 = arith.constant 0 : index
    %c0_2 = arith.constant 0 : index
    %1 = vector.load %arg1[%c0_1, %c0_2] : memref<8x32xf32, #tpu.memory_space<vmem>>, vector<8x32xf32>
    %2 = vector.broadcast %0 : vector<1x32xf32> to vector<8x32xf32>
    %3 = arith.subf %1, %2 : vector<8x32xf32>
    %cst = arith.constant dense<0.000000e+00> : vector<32xf32>
    %4 = vector.multi_reduction <add>, %3, %cst [0] : vector<8x32xf32> to vector<32xf32>
    %5 = vector.shape_cast %4 : vector<32xf32> to vector<1x32xf32>
    %6 = arith.mulf %3, %3 : vector<8x32xf32>
    %cst_3 = arith.constant dense<0.000000e+00> : vector<32xf32>
    %7 = vector.multi_reduction <add>, %6, %cst_3 [0] : vector<8x32xf32> to vector<32xf32>
    %8 = vector.shape_cast %7 : vector<32xf32> to vector<1x32xf32>
    %cst_4 = arith.constant 8.000000e+00 : f32
    %9 = vector.broadcast %cst_4 : f32 to vector<1x32xf32>
    %10 = arith.divf %5, %9 : vector<1x32xf32>
    %11 = arith.addf %0, %10 : vector<1x32xf32>
    %cst_5 = arith.constant 8.000000e+00 : f32
    %12 = vector.broadcast %cst_5 : f32 to vector<1x32xf32>
    %13 = arith.mulf %12, %10 : vector<1x32xf32>
    %14 = arith.mulf %13, %10 : vector<1x32xf32>
    %15 = arith.subf %8, %14 : vector<1x32xf32>
    %cst_6 = arith.constant 0.000000e+00 : f32
    %16 = vector.broadcast %cst_6 : f32 to vector<1x32xf32>
    %17 = arith.maximumf %15, %16 : vector<1x32xf32>
    %cst_7 = arith.constant 7.000000e+00 : f32
    %18 = vector.broadcast %cst_7 : f32 to vector<1x32xf32>
    %19 = arith.divf %17, %18 : vector<1x32xf32>
    %cst_8 = arith.constant 9.99999993E-9 : f32
    %20 = vector.broadcast %cst_8 : f32 to vector<1x32xf32>
    %21 = arith.addf %19, %20 : vector<1x32xf32>
    %22 = math.rsqrt %21 : vector<1x32xf32>
    %c0_9 = arith.constant 0 : index
    %c0_10 = arith.constant 0 : index
    %23 = vector.load %arg2[%c0_9, %c0_10] : memref<4x32xf32, #tpu.memory_space<vmem>>, vector<1x32xf32>
    %24 = arith.mulf %23, %22 : vector<1x32xf32>
    %c1 = arith.constant 1 : index
    %c0_11 = arith.constant 0 : index
    %25 = vector.load %arg2[%c1, %c0_11] : memref<4x32xf32, #tpu.memory_space<vmem>>, vector<1x32xf32>
    %26 = arith.mulf %11, %24 : vector<1x32xf32>
    %27 = arith.subf %25, %26 : vector<1x32xf32>
    %c0_12 = arith.constant 0 : index
    %c0_13 = arith.constant 0 : index
    %28 = vector.load %arg1[%c0_12, %c0_13] : memref<8x32xf32, #tpu.memory_space<vmem>>, vector<8x32xf32>
    %29 = vector.broadcast %24 : vector<1x32xf32> to vector<8x32xf32>
    %30 = arith.mulf %28, %29 : vector<8x32xf32>
    %31 = vector.broadcast %27 : vector<1x32xf32> to vector<8x32xf32>
    %32 = arith.addf %30, %31 : vector<8x32xf32>
    %c0_14 = arith.constant 0 : index
    %c0_15 = arith.constant 0 : index
    %33 = vector.load %arg3[%c0_14, %c0_15] : memref<8x32xf32, #tpu.memory_space<vmem>>, vector<8x32xf32>
    tpu.vector_store %arg3[%c0_14, %c0_15], %32 {strides = array<i32>} : memref<8x32xf32, #tpu.memory_space<vmem>>, vector<8x32xf32>,
    %c2 = arith.constant 2 : index
    %c0_16 = arith.constant 0 : index
    %34 = vector.load %arg2[%c2, %c0_16] : memref<4x32xf32, #tpu.memory_space<vmem>>, vector<1x32xf32>
    %cst_17 = arith.constant 0.899999976 : f32
    %35 = vector.broadcast %cst_17 : f32 to vector<1x32xf32>
    %36 = arith.mulf %35, %34 : vector<1x32xf32>
    %cst_18 = arith.constant 1.000000e+00 : f32
    %cst_19 = arith.constant 0.899999976 : f32
    %37 = arith.subf %cst_18, %cst_19 : f32
    %38 = vector.broadcast %37 : f32 to vector<1x32xf32>
    %39 = arith.mulf %38, %11 : vector<1x32xf32>
    %40 = arith.addf %36, %39 : vector<1x32xf32>
    %c0_20 = arith.constant 0 : index
    %c0_21 = arith.constant 0 : index
    %41 = vector.load %arg4[%c0_20, %c0_21] : memref<2x32xf32, #tpu.memory_space<vmem>>, vector<1x32xf32>
    tpu.vector_store %arg4[%c0_20, %c0_21], %40 {strides = array<i32>} : memref<2x32xf32, #tpu.memory_space<vmem>>, vector<1x32xf32>,
    %c3 = arith.constant 3 : index
    %c0_22 = arith.constant 0 : index
    %42 = vector.load %arg2[%c3, %c0_22] : memref<4x32xf32, #tpu.memory_space<vmem>>, vector<1x32xf32>
    %cst_23 = arith.constant 0.899999976 : f32
    %43 = vector.broadcast %cst_23 : f32 to vector<1x32xf32>
    %44 = arith.mulf %43, %42 : vector<1x32xf32>
    %cst_24 = arith.constant 1.000000e+00 : f32
    %cst_25 = arith.constant 0.899999976 : f32
    %45 = arith.subf %cst_24, %cst_25 : f32
    %46 = vector.broadcast %45 : f32 to vector<1x32xf32>
    %47 = arith.mulf %46, %19 : vector<1x32xf32>
    %48 = arith.addf %44, %47 : vector<1x32xf32>
    %c1_26 = arith.constant 1 : index
    %c0_27 = arith.constant 0 : index
    %49 = vector.load %arg4[%c1_26, %c0_27] : memref<2x32xf32, #tpu.memory_space<vmem>>, vector<1x32xf32>
    tpu.vector_store %arg4[%c1_26, %c0_27], %48 {strides = array<i32>} : memref<2x32xf32, #tpu.memory_space<vmem>>, vector<1x32xf32>,
    return
  }
  func.func @transform_0(%arg0: i32) -> (i32, i32) {
    %c0_i32 = arith.constant 0 : i32
    %c0_i32_0 = arith.constant 0 : i32
    return %c0_i32, %arg0 : i32, i32
  }
  func.func @transform_1(%arg0: i32) -> (i32, i32) {
    %c0_i32 = arith.constant 0 : i32
    %c0_i32_0 = arith.constant 0 : i32
    return %c0_i32, %arg0 : i32, i32
  }
  func.func @transform_2(%arg0: i32) -> (i32, i32) {
    %c0_i32 = arith.constant 0 : i32
    %c0_i32_0 = arith.constant 0 : i32
    return %c0_i32, %arg0 : i32, i32
  }
  func.func @transform_3(%arg0: i32) -> (i32, i32) {
    %c0_i32 = arith.constant 0 : i32
    %c0_i32_0 = arith.constant 0 : i32
    return %c0_i32, %arg0 : i32, i32
  }
}

</mosaic_0001>

<llo_original>
// kernel: tpu_custom_call.1
$region0: #{tpu_custom_call.1}
  #allocation0 [shape = 'u32[]', space=smem, size = 0x4, offset = 0x4, fixed_abs, tag = 'smem constant byte address 0x4 - core index']
  #allocation1 [shape = 'u32[144,128]{1,0:T(1,128)}', space=vmem, size = 0x12000, scoped, tag = 'internal scratch']
  %s0 = inlined_call_operand.hbm [shape: f32[8,32], index: 0, kind: input, shape index: {}]
  %s1 = inlined_call_operand.hbm [shape: f32[4,32], index: 1, kind: input, shape index: {}]
  %s2 = inlined_call_operand.hbm [shape: f32[8,32], index: 2, kind: output, shape index: {0}]
  %s3 = inlined_call_operand.hbm [shape: f32[2,32], index: 3, kind: output, shape index: {1}]
  %4 = xla_tuple %s2, %s3
  %s5 = sld [smem:[#allocation0]]
  $region34: #{tpu_custom_call.1} parent=0
    _
  %s7 = ssub.s32 1, %s5
  %s8 = scalar_select 0, %s7, %s5
  $region1: #{tpu_custom_call.1} parent=0
    #allocation2 [shape = 'u8[4096]{0}', space=vmem, size = 0x1000, scoped, tag = 'input window, operand 0, single buffered']
    #allocation3 [shape = 's32[1]{0}', space=sflag, size = 0x4, scoped, tag = 'scoped memory for tpu_custom_call.1']
    #allocation4 [shape = 's32[1]{0}', space=sflag, size = 0x4, scoped, tag = 'scoped memory for tpu_custom_call.1']
    #allocation5 [shape = 'u8[2048]{0}', space=vmem, size = 0x800, scoped, tag = 'input window, operand 1, single buffered']
    #allocation6 [shape = 's32[1]{0}', space=sflag, size = 0x4, scoped, tag = 'scoped memory for tpu_custom_call.1']
    #allocation7 [shape = 'u8[4096]{0}', space=vmem, size = 0x1000, scoped, tag = 'output window, operand 0, single buffered']
    #allocation8 [shape = 'u8[1024]{0}', space=vmem, size = 0x400, scoped, tag = 'output window, operand 1, single buffered']
    #allocation9 [shape = 's32[1]{0}', space=sflag, size = 0x4, scoped, tag = 'scoped memory for tpu_custom_call.1']
    %9 = vsyncpa [#allocation3], 0
    %10 = vsyncpa [#allocation6], 0
    %11 = vsyncpa [#allocation4], 0
    %12 = vsyncpa [#allocation9], 0
    // Predicated region
    $region2: #{tpu_custom_call.1} parent=1 // pred_check
      _
    $region3: #{tpu_custom_call.1} parent=1 // pred_check_branch
      %14 = sbr.rel (0) target = $region5
    $region4: #{tpu_custom_call.1} parent=1 // pred_region
      %s16 = ssub.s32 128, 128
      %17 = vsyncadd [#allocation3], %s16
      %s19 = sshll.u32 [#allocation2], 4
      %s20 = int_to_ptr.vmem [resolvable:$true] %s19
      %22 = dma.hbm_to_vmem [thread:$0]  %s0, 128, %s20, [#allocation3]
    $region5: #{tpu_custom_call.1} parent=1 // pred_fallthru
      _
    // Predicated region
    $region6: #{tpu_custom_call.1} parent=1 // pred_check
      _
    $region7: #{tpu_custom_call.1} parent=1 // pred_check_branch
      %24 = sbr.rel (0) target = $region9
    $region8: #{tpu_custom_call.1} parent=1 // pred_region
      %s26 = ssub.s32 64, 64
      %27 = vsyncadd [#allocation6], %s26
      %s29 = sshll.u32 [#allocation5], 4
      %s30 = int_to_ptr.vmem [resolvable:$true] %s29
      %32 = dma.hbm_to_vmem [thread:$0]  %s1, 64, %s30, [#allocation6]
    $region9: #{tpu_custom_call.1} parent=1 // pred_fallthru
      _
    // Predicated region
    $region10: #{tpu_custom_call.1} parent=1 // pred_check
      _
    $region11: #{tpu_custom_call.1} parent=1 // pred_check_branch
      %34 = sbr.rel (0) target = $region13
    $region12: #{tpu_custom_call.1} parent=1 // pred_region
      %35 = dma.done [#allocation3], 128
    $region13: #{tpu_custom_call.1} parent=1 // pred_fallthru
      _
    // Predicated region
    $region14: #{tpu_custom_call.1} parent=1 // pred_check
      _
    $region15: #{tpu_custom_call.1} parent=1 // pred_check_branch
      %37 = sbr.rel (0) target = $region17
    $region16: #{tpu_custom_call.1} parent=1 // pred_region
      %38 = dma.done [#allocation6], 64
    $region17: #{tpu_custom_call.1} parent=1 // pred_fallthru
      _
    %v39 = vld [vmem:[#allocation2] sm:$0x1]
    %v40 = vld [vmem:[#allocation2] sm:$0xff]
    %v41 = vlaneseq
    %v42 = vshrl.u32 %v41, 7
    %v43 = vsub.s32 0, %v42
    %v44 = vrot.slane %v39, %v43
    %v45 = vsub.f32 %v40, %v44
    %vm46 = vcmask 261120
    %v47 = vsel %vm46, %v45, 0.0
    %v48 = vrot.slane %v47, 4
    %v49 = vadd.f32 %v47, %v48
    %v50 = vrot.slane %v49, 2
    %v51 = vadd.f32 %v49, %v50
    %v52 = vrot.slane %v51, 1
    %v53 = vadd.f32 %v51, %v52
    %v54 = vmul.f32 %v45, %v45
    %v55 = vsel %vm46, %v54, 0.0
    %v56 = vrot.slane %v55, 4
    %v57 = vadd.f32 %v55, %v56
    %v58 = vrot.slane %v57, 2
    %v59 = vadd.f32 %v57, %v58
    %v60 = vrot.slane %v59, 1
    %v61 = vadd.f32 %v59, %v60
    %v62 = vrcp.pop 8.0
    %v63 = vmul.f32 %v53, %v62
    %v64 = vadd.f32 %v39, %v63
    %v65 = vmul.f32 %v63, 8.0
    %v66 = vmul.f32 %v65, %v63
    %v67 = vsub.f32 %v61, %v66
    %v68 = vmax.f32 %v67, 0.0
    %v69 = vrcp.pop 7.0
    %v70 = vmul.f32 %v68, %v69
    %v71 = vadd.f32 %v70, 1e-08
    %v72 = vrsqrt.pop %v71
    %v73 = vld [vmem:[#allocation5] sm:$0x1]
    %v74 = vmul.f32 %v73, %v72
    %v75 = vld [vmem:[#allocation5 + $0x1] sm:$0x1]
    %v76 = vmul.f32 %v64, %v74
    %v77 = vsub.f32 %v75, %v76
    %v78 = vlaneseq
    %v79 = vshrl.u32 %v78, 7
    %v80 = vsub.s32 0, %v79
    %v81 = vrot.slane %v74, %v80
    %v82 = vmul.f32 %v40, %v81
    %v83 = vlaneseq
    %v84 = vshrl.u32 %v83, 7
    %v85 = vsub.s32 0, %v84
    %v86 = vrot.slane %v77, %v85
    %v87 = vadd.f32 %v82, %v86
    %88 = vst.msk [vmem:[#allocation7] sm:$0xff] %vm46, %v87
    %v89 = vld [vmem:[#allocation5 + $0x2] sm:$0x1]
    %v90 = vmul.f32 %v89, 0.9
    %v91 = vmul.f32 %v64, 0.100000024
    %v92 = vadd.f32 %v90, %v91
    %vm93 = vcmask 253952
    %94 = vst.msk [vmem:[#allocation8] sm:$0x1] %vm93, %v92
    %v95 = vld [vmem:[#allocation5 + $0x3] sm:$0x1]
    %v96 = vmul.f32 %v95, 0.9
    %v97 = vmul.f32 %v70, 0.100000024
    %v98 = vadd.f32 %v96, %v97
    %99 = vst.msk [vmem:[#allocation8 + $0x1] sm:$0x1] %vm93, %v98
    // Predicated region
    $region18: #{tpu_custom_call.1} parent=1 // pred_check
      _
    $region19: #{tpu_custom_call.1} parent=1 // pred_check_branch
      %101 = sbr.rel (0) target = $region21
    $region20: #{tpu_custom_call.1} parent=1 // pred_region
      %s103 = ssub.s32 128, 128
      %104 = vsyncadd [#allocation4], %s103
      %s106 = sshll.u32 [#allocation7], 4
      %s107 = int_to_ptr.vmem [resolvable:$true] %s106
      %109 = dma.vmem_to_hbm [thread:$0]  %s107, 128, %s2, [#allocation4]
    $region21: #{tpu_custom_call.1} parent=1 // pred_fallthru
      _
    // Predicated region
    $region22: #{tpu_custom_call.1} parent=1 // pred_check
      _
    $region23: #{tpu_custom_call.1} parent=1 // pred_check_branch
      %111 = sbr.rel (0) target = $region25
    $region24: #{tpu_custom_call.1} parent=1 // pred_region
      %s113 = ssub.s32 32, 32
      %114 = vsyncadd [#allocation9], %s113
      %s116 = sshll.u32 [#allocation8], 4
      %s117 = int_to_ptr.vmem [resolvable:$true] %s116
      %119 = dma.vmem_to_hbm [thread:$0]  %s117, 32, %s3, [#allocation9]
    $region25: #{tpu_custom_call.1} parent=1 // pred_fallthru
      _
    // Predicated region
    $region26: #{tpu_custom_call.1} parent=1 // pred_check
      _
    $region27: #{tpu_custom_call.1} parent=1 // pred_check_branch
      %121 = sbr.rel (0) target = $region29
    $region28: #{tpu_custom_call.1} parent=1 // pred_region
      %122 = dma.done [#allocation4], 128
    $region29: #{tpu_custom_call.1} parent=1 // pred_fallthru
      _
    // Predicated region
    $region30: #{tpu_custom_call.1} parent=1 // pred_check
      _
    $region31: #{tpu_custom_call.1} parent=1 // pred_check_branch
      %124 = sbr.rel (0) target = $region33
    $region32: #{tpu_custom_call.1} parent=1 // pred_region
      %125 = dma.done [#allocation9], 32
    $region33: #{tpu_custom_call.1} parent=1 // pred_fallthru
      _
    %126 = vsyncpa [#allocation3], 1
    %127 = vsyncpa [#allocation6], 1
    %128 = vsyncpa [#allocation4], 1
    %129 = vsyncpa [#allocation9], 1

</llo_original>
